<compile_context>
chip_gen: v6e
topology: v6e:2x2x1
jax: 0.10.0
libtpu: 0.0.40
codegen_flags: <defaults>
</compile_context>

<pallas_src>
import functools

import jax
import jax.numpy as jnp
from jax.experimental import pallas as pl
from jax.experimental.pallas import tpu as pltpu

_LANES = 1024          # lane-dense minor dim (multiple of 128)
_INNER_MAX = 256       # in-kernel streaming chunk (rows)


def _cdiv(a, b):
    return -(-a // b)


def _round_up(x, m):
    return _cdiv(x, m) * m


def _num_tensorcores():
    """Best-effort TensorCore count (2 on v7x); falls back to 1."""
    try:
        info = pltpu.get_tpu_info()
        for name in ("num_cores", "num_tensorcores", "cores_per_chip",
                     "num_cores_per_chip", "tensorcores_per_chip"):
            v = getattr(info, name, None)
            if isinstance(v, int) and v >= 1:
                return min(int(v), 2)
    except Exception:
        pass
    return 1


def _mse_sums_kernel(pred_ref, tgt_ref, mask_ref, out_ref, loss_acc, mask_acc,
                     *, block_rows, inner_rows, valid_rows):
    # grid = (num_cores, steps): axis 0 "parallel" (per-core partial sums),
    # axis 1 the sequential reduction over this core's blocks.
    c = pl.program_id(0)
    i = pl.program_id(1)

    @pl.when(i == 0)
    def _init():
        loss_acc[...] = jnp.zeros_like(loss_acc)
        mask_acc[...] = jnp.zeros_like(mask_acc)

    # Logical (unclamped) block id -> global row of this block's first row.
    # The input index_map clamps to the last real block, so overhanging blocks
    # of an uneven core split re-read the last block; row masking below zeroes
    # their contribution (no double counting) and also zeroes the garbage rows
    # of the partial last block.
    blk = c * pl.num_programs(1) + i
    row0 = blk * block_rows

    n_inner = block_rows // inner_rows

    def body(j, carry):
        r = pl.multiple_of(j * inner_rows, inner_rows)
        p = pred_ref[pl.ds(r, inner_rows), :].astype(jnp.float32)
        t = tgt_ref[pl.ds(r, inner_rows), :].astype(jnp.float32)
        m = mask_ref[pl.ds(r, inner_rows), :].astype(jnp.float32)
        res = p - t

        rows = row0 + r + jax.lax.broadcasted_iota(jnp.int32, (inner_rows, 1), 0)
        valid = rows < valid_rows                      # (inner_rows, 1) bool
        lterm = jnp.where(valid, m * res * res, 0.0)   # select: OOB garbage killed
        mterm = jnp.where(valid, m, 0.0)

        # Layout-preserving split of the sublane-major axis; pure VPU adds into
        # the small (8, LANES) accumulators (no per-step XLU reduce, no large
        # accumulator read-modify-write traffic).
        loss_acc[...] += jnp.sum(lterm.reshape(inner_rows // 8, 8, _LANES), axis=0)
        mask_acc[...] += jnp.sum(mterm.reshape(inner_rows // 8, 8, _LANES), axis=0)
        return carry

    if n_inner == 1:
        body(0, 0)
    else:
        jax.lax.fori_loop(0, n_inner, body, 0, unroll=(n_inner <= 8))

    @pl.when(i == pl.num_programs(1) - 1)
    def _finalize():
        # One XLU reduce per core, once per kernel invocation; single full-block
        # store of the (1, 2, 128) partial-sum tile.
        loss_sum = jnp.sum(loss_acc[...])
        mask_sum = jnp.sum(mask_acc[...])
        sel = jax.lax.broadcasted_iota(jnp.int32, (1, 2, 128), 1) == 0
        out_ref[...] = jnp.where(sel, loss_sum, mask_sum)


def mse_loss_pallas(prediction, target, mask, *, max_block_rows=1024,
                    num_cores=None):
    """Masked MSE loss with batch-based reduction.

    prediction, target, mask: arrays of shape (B, H, W).  Any float dtype for
    prediction/target (bf16 recommended for bandwidth) and any float/int/bool
    dtype for mask; accumulation is in float32.  Returns a scalar float32 loss.
    """
    assert prediction.shape == target.shape == mask.shape
    total = int(prediction.size)

    if num_cores is None:
        num_cores = _num_tensorcores()

    # Lane-dense 2D view: (rows, 1024), blocked over rows.
    rows_valid = _cdiv(total, _LANES)
    # block_rows: multiple of 32 (int8/bool mask (32,128) tiling), as big as
    # allowed so each grid step streams a large HBM tile.
    block_rows = min(_round_up(max_block_rows, 32), _round_up(rows_valid, 32))
    rows_arr = max(rows_valid, block_rows)
    n_blocks = _cdiv(rows_arr, block_rows)
    num_cores = max(1, min(num_cores, n_blocks))
    steps = _cdiv(n_blocks, num_cores)

    # In-kernel streaming chunk (divides block_rows, multiple of 32).
    inner_rows = min(_INNER_MAX, block_rows)
    while block_rows % inner_rows:
        inner_rows //= 2

    padded_total = rows_arr * _LANES

    def to2d(x):
        flat = x.reshape(-1)
        if padded_total != total:
            # Only for ragged (total % 1024 != 0) or tiny inputs.  Zero padding
            # is exact because the padded mask is 0.
            # TODO(synk): fold the sub-row tail into the kernel to avoid the copy.
            flat = jnp.pad(flat, (0, padded_total - total))
        return flat.reshape(rows_arr, _LANES)

    # Inputs keep their caller dtypes (no wrapper upcast) -> minimal HBM bytes.
    pred2d, tgt2d, mask2d = to2d(prediction), to2d(target), to2d(mask)

    last_blk = n_blocks - 1

    def in_map(c, i):
        # Clamp so the DMA never targets a block fully past the array; the
        # kernel's row masking removes any duplicated contribution.
        return (jnp.minimum(c * steps + i, last_blk), 0)

    in_spec = pl.BlockSpec((block_rows, _LANES), in_map)
    out_spec = pl.BlockSpec((1, 2, 128), lambda c, i: (c, 0, 0))

    # Explicit scoped-VMEM budget: 3 inputs x 2 pipeline buffers + headroom,
    # capped well inside v7x's 64 MiB/TC physical VMEM.
    in_bytes = sum(2 * block_rows * _LANES * x.dtype.itemsize
                   for x in (pred2d, tgt2d, mask2d))
    vmem_limit = int(min(60 << 20, max(32 << 20, int(in_bytes * 1.3) + (4 << 20))))

    kernel = functools.partial(_mse_sums_kernel,
                               block_rows=block_rows,
                               inner_rows=inner_rows,
                               valid_rows=rows_valid)

    partials = pl.pallas_call(
        kernel,
        out_shape=jax.ShapeDtypeStruct((num_cores, 2, 128), jnp.float32),
        grid_spec=pltpu.PrefetchScalarGridSpec(
            num_scalar_prefetch=0,
            grid=(num_cores, steps),
            in_specs=[in_spec, in_spec, in_spec],
            out_specs=out_spec,
            scratch_shapes=[
                pltpu.VMEM((8, _LANES), jnp.float32),   # loss accumulator
                pltpu.VMEM((8, _LANES), jnp.float32),   # mask accumulator
            ],
        ),
        compiler_params=pltpu.CompilerParams(
            dimension_semantics=("parallel", "arbitrary"),
            vmem_limit_bytes=vmem_limit,
        ),
    )(pred2d, tgt2d, mask2d)

    loss_sum = jnp.sum(partials[:, 0, 0])
    mask_sum = jnp.sum(partials[:, 1, 0])
    divisor = 2.0 * mask_sum                          # == sum(2 * M)
    safe_div = jnp.where(divisor == 0.0, jnp.float32(1.0), divisor)
    return jnp.where(divisor == 0.0, jnp.float32(0.0), loss_sum / safe_div)


def mse_loss_ref(prediction, target, mask):
    """Pure-JAX reference mirroring the PyTorch code (batch-based reduction)."""
    m_per_img = jnp.sum(mask, axis=(1, 2))
    res = prediction - target
    image_loss = jnp.sum(mask * res * res, axis=(1, 2))
    divisor = jnp.sum(2.0 * m_per_img)
    return jnp.where(divisor == 0.0, 0.0, jnp.sum(image_loss) / divisor)


if __name__ == "__main__":
    key = jax.random.PRNGKey(0)
    kp, kt, km = jax.random.split(key, 3)

    # Small shape consistent with the module (depth-style masked loss).
    B, H, W = 2, 16, 16
    prediction = jax.random.normal(kp, (B, H, W), dtype=jnp.float32)
    target = jax.random.normal(kt, (B, H, W), dtype=jnp.float32)
    mask = (jax.random.uniform(km, (B, H, W)) > 0.3).astype(jnp.float32)

    loss = mse_loss_pallas(prediction, target, mask)
    jax.block_until_ready(loss)
    ref = mse_loss_ref(prediction, target, mask)
    assert jnp.allclose(loss, ref, rtol=1e-5, atol=1e-6), (loss, ref)

    # Degenerate all-zero-mask case (PyTorch returns 0).
    zloss = mse_loss_pallas(prediction, target, jnp.zeros_like(mask))
    jax.block_until_ready(zloss)
    assert float(zloss) == 0.0

    # Multi-block path with a partial last block and an uneven 2-way core split
    # (3 blocks of 32 rows over 72 valid rows; the 4th, clamped block is fully
    # masked).  8*96*96 = 73728 elements = 72 lane-dense rows, no padding.
    kp2, kt2, km2 = jax.random.split(jax.random.PRNGKey(1), 3)
    B2, H2, W2 = 8, 96, 96
    p2 = jax.random.normal(kp2, (B2, H2, W2), dtype=jnp.float32)
    t2 = jax.random.normal(kt2, (B2, H2, W2), dtype=jnp.float32)
    m2 = (jax.random.uniform(km2, (B2, H2, W2)) > 0.5).astype(jnp.float32)
    loss2 = mse_loss_pallas(p2, t2, m2, max_block_rows=32, num_cores=2)
    jax.block_until_ready(loss2)
    ref2 = mse_loss_ref(p2, t2, m2)
    assert jnp.allclose(loss2, ref2, rtol=1e-5, atol=1e-5), (loss2, ref2)

    # Bandwidth contract: bf16 prediction/target + int8 mask fed straight into
    # the kernel (no wrapper upcast); reference on the same rounded values.
    p3 = p2.astype(jnp.bfloat16)
    t3 = t2.astype(jnp.bfloat16)
    m3 = m2.astype(jnp.int8)
    loss3 = mse_loss_pallas(p3, t3, m3, max_block_rows=64)
    jax.block_until_ready(loss3)
    ref3 = mse_loss_ref(p3.astype(jnp.float32), t3.astype(jnp.float32),
                        m3.astype(jnp.float32))
    assert jnp.allclose(loss3, ref3, rtol=2e-3, atol=2e-3), (loss3, ref3)

    print("KERNEL_OK")
</pallas_src>

<mosaic_0001>
module attributes {stable_mosaic.version = 11 : i64} {
  func.func @_mse_sums_kernel(%arg0: i32, %arg1: i32, %arg2: memref<32x1024xf32, #tpu.memory_space<vmem>>, %arg3: memref<32x1024xf32, #tpu.memory_space<vmem>>, %arg4: memref<32x1024xf32, #tpu.memory_space<vmem>>, %arg5: memref<1x2x128xf32, #tpu.memory_space<vmem>>, %arg6: memref<8x1024xf32, #tpu.memory_space<vmem>>, %arg7: memref<8x1024xf32, #tpu.memory_space<vmem>>) attributes {dimension_semantics = [#tpu.dimension_semantics<parallel>, #tpu.dimension_semantics<arbitrary>], iteration_bounds = array<i64: 1, 1>, scalar_prefetch = 0 : i64, scratch_operands = 2 : i64, tpu.core_type = #tpu.core_type<tc>, window_params = [{transform_indices = @transform_0, window_bounds = array<i64: 32, 1024>}, {transform_indices = @transform_1, window_bounds = array<i64: 32, 1024>}, {transform_indices = @transform_2, window_bounds = array<i64: 32, 1024>}, {transform_indices = @transform_3, window_bounds = array<i64: 1, 2, 128>}]} {
    %c0_i32 = arith.constant 0 : i32
    %0 = arith.cmpi eq, %arg1, %c0_i32 : i32
    %1 = arith.extui %0 : i1 to i32
    %c0_i32_0 = arith.constant 0 : i32
    %2 = arith.cmpi ne, %1, %c0_i32_0 : i32
    scf.if %2 {
      %cst_18 = arith.constant 0.000000e+00 : f32
      %43 = vector.broadcast %cst_18 : f32 to vector<8x1024xf32>
      %c0_19 = arith.constant 0 : index
      %c0_20 = arith.constant 0 : index
      %44 = vector.load %arg6[%c0_19, %c0_20] : memref<8x1024xf32, #tpu.memory_space<vmem>>, vector<8x1024xf32>
      tpu.vector_store %arg6[%c0_19, %c0_20], %43 {strides = array<i32>} : memref<8x1024xf32, #tpu.memory_space<vmem>>, vector<8x1024xf32>,
      %cst_21 = arith.constant 0.000000e+00 : f32
      %45 = vector.broadcast %cst_21 : f32 to vector<8x1024xf32>
      %c0_22 = arith.constant 0 : index
      %c0_23 = arith.constant 0 : index
      %46 = vector.load %arg7[%c0_22, %c0_23] : memref<8x1024xf32, #tpu.memory_space<vmem>>, vector<8x1024xf32>
      tpu.vector_store %arg7[%c0_22, %c0_23], %45 {strides = array<i32>} : memref<8x1024xf32, #tpu.memory_space<vmem>>, vector<8x1024xf32>,
    } else {
    }
    %c1_i32 = arith.constant 1 : i32
    %3 = arith.muli %arg0, %c1_i32 : i32
    %4 = arith.addi %3, %arg1 : i32
    %c32_i32 = arith.constant 32 : i32
    %5 = arith.muli %4, %c32_i32 : i32
    %c0_i32_1 = arith.constant 0 : i32
    %6 = tpu.assume_multiple %c0_i32_1, 32 : i32
    %7 = arith.index_cast %6 : i32 to index
    %c0 = arith.constant 0 : index
    %8 = vector.load %arg2[%7, %c0] : memref<32x1024xf32, #tpu.memory_space<vmem>>, vector<32x1024xf32>
    %9 = arith.index_cast %6 : i32 to index
    %c0_2 = arith.constant 0 : index
    %10 = vector.load %arg3[%9, %c0_2] : memref<32x1024xf32, #tpu.memory_space<vmem>>, vector<32x1024xf32>
    %11 = arith.index_cast %6 : i32 to index
    %c0_3 = arith.constant 0 : index
    %12 = vector.load %arg4[%11, %c0_3] : memref<32x1024xf32, #tpu.memory_space<vmem>>, vector<32x1024xf32>
    %13 = arith.subf %8, %10 : vector<32x1024xf32>
    %14 = arith.addi %5, %6 : i32
    %15 = tpu.iota {dimensions = array<i32: 0>} : vector<32x1xi32>
    %16 = vector.broadcast %14 : i32 to vector<32x1xi32>
    %17 = arith.addi %16, %15 : vector<32x1xi32>
    %c1_i32_4 = arith.constant 1 : i32
    %18 = vector.broadcast %c1_i32_4 : i32 to vector<32x1xi32>
    %19 = arith.cmpi slt, %17, %18 : vector<32x1xi32>
    %20 = arith.mulf %12, %13 : vector<32x1024xf32>
    %21 = arith.mulf %20, %13 : vector<32x1024xf32>
    %cst = arith.constant 0.000000e+00 : f32
    %22 = vector.shape_cast %19 : vector<32x1xi1> to vector<32x1xi1>
    %23 = vector.broadcast %22 : vector<32x1xi1> to vector<32x1024xi1>
    %24 = vector.broadcast %cst : f32 to vector<32x1024xf32>
    %25 = arith.select %23, %21, %24 : vector<32x1024xi1>, vector<32x1024xf32>
    %cst_5 = arith.constant 0.000000e+00 : f32
    %26 = vector.shape_cast %19 : vector<32x1xi1> to vector<32x1xi1>
    %27 = vector.broadcast %26 : vector<32x1xi1> to vector<32x1024xi1>
    %28 = vector.broadcast %cst_5 : f32 to vector<32x1024xf32>
    %29 = arith.select %27, %12, %28 : vector<32x1024xi1>, vector<32x1024xf32>
    %c0_6 = arith.constant 0 : index
    %c0_7 = arith.constant 0 : index
    %30 = vector.load %arg6[%c0_6, %c0_7] : memref<8x1024xf32, #tpu.memory_space<vmem>>, vector<8x1024xf32>
    %31 = vector.shape_cast %25 : vector<32x1024xf32> to vector<4x8x1024xf32>
    %cst_8 = arith.constant dense<0.000000e+00> : vector<8x1024xf32>
    %32 = vector.multi_reduction <add>, %31, %cst_8 [0] : vector<4x8x1024xf32> to vector<8x1024xf32>
    %33 = arith.addf %30, %32 : vector<8x1024xf32>
    %c0_9 = arith.constant 0 : index
    %c0_10 = arith.constant 0 : index
    %34 = vector.load %arg6[%c0_9, %c0_10] : memref<8x1024xf32, #tpu.memory_space<vmem>>, vector<8x1024xf32>
    tpu.vector_store %arg6[%c0_9, %c0_10], %33 {strides = array<i32>} : memref<8x1024xf32, #tpu.memory_space<vmem>>, vector<8x1024xf32>,
    %c0_11 = arith.constant 0 : index
    %c0_12 = arith.constant 0 : index
    %35 = vector.load %arg7[%c0_11, %c0_12] : memref<8x1024xf32, #tpu.memory_space<vmem>>, vector<8x1024xf32>
    %36 = vector.shape_cast %29 : vector<32x1024xf32> to vector<4x8x1024xf32>
    %cst_13 = arith.constant dense<0.000000e+00> : vector<8x1024xf32>
    %37 = vector.multi_reduction <add>, %36, %cst_13 [0] : vector<4x8x1024xf32> to vector<8x1024xf32>
    %38 = arith.addf %35, %37 : vector<8x1024xf32>
    %c0_14 = arith.constant 0 : index
    %c0_15 = arith.constant 0 : index
    %39 = vector.load %arg7[%c0_14, %c0_15] : memref<8x1024xf32, #tpu.memory_space<vmem>>, vector<8x1024xf32>
    tpu.vector_store %arg7[%c0_14, %c0_15], %38 {strides = array<i32>} : memref<8x1024xf32, #tpu.memory_space<vmem>>, vector<8x1024xf32>,
    %c0_i32_16 = arith.constant 0 : i32
    %40 = arith.cmpi eq, %arg1, %c0_i32_16 : i32
    %41 = arith.extui %40 : i1 to i32
    %c0_i32_17 = arith.constant 0 : i32
    %42 = arith.cmpi ne, %41, %c0_i32_17 : i32
    scf.if %42 {
      %c0_18 = arith.constant 0 : index
      %c0_19 = arith.constant 0 : index
      %43 = vector.load %arg6[%c0_18, %c0_19] : memref<8x1024xf32, #tpu.memory_space<vmem>>, vector<8x1024xf32>
      %44 = vector.shape_cast %43 : vector<8x1024xf32> to vector<1x8x1024xf32>
      %cst_20 = arith.constant dense<0.000000e+00> : vector<1xf32>
      %45 = vector.multi_reduction <add>, %44, %cst_20 [1, 2] : vector<1x8x1024xf32> to vector<1xf32>
      %46 = vector.shape_cast %45 : vector<1xf32> to vector<1x1x1xf32>
      %47 = vector.extract %46[0, 0, 0] : f32 from vector<1x1x1xf32>
      %c0_21 = arith.constant 0 : index
      %c0_22 = arith.constant 0 : index
      %48 = vector.load %arg7[%c0_21, %c0_22] : memref<8x1024xf32, #tpu.memory_space<vmem>>, vector<8x1024xf32>
      %49 = vector.shape_cast %48 : vector<8x1024xf32> to vector<1x8x1024xf32>
      %cst_23 = arith.constant dense<0.000000e+00> : vector<1xf32>
      %50 = vector.multi_reduction <add>, %49, %cst_23 [1, 2] : vector<1x8x1024xf32> to vector<1xf32>
      %51 = vector.shape_cast %50 : vector<1xf32> to vector<1x1x1xf32>
      %52 = vector.extract %51[0, 0, 0] : f32 from vector<1x1x1xf32>
      %53 = tpu.iota {dimensions = array<i32: 1>} : vector<1x2x128xi32>
      %c0_i32_24 = arith.constant 0 : i32
      %54 = vector.broadcast %c0_i32_24 : i32 to vector<1x2x128xi32>
      %55 = arith.cmpi eq, %53, %54 : vector<1x2x128xi32>
      %56 = vector.broadcast %47 : f32 to vector<1x2x128xf32>
      %57 = vector.broadcast %52 : f32 to vector<1x2x128xf32>
      %58 = arith.select %55, %56, %57 : vector<1x2x128xi1>, vector<1x2x128xf32>
      %c0_25 = arith.constant 0 : index
      %c0_26 = arith.constant 0 : index
      %c0_27 = arith.constant 0 : index
      %59 = vector.load %arg5[%c0_25, %c0_26, %c0_27] : memref<1x2x128xf32, #tpu.memory_space<vmem>>, vector<1x2x128xf32>
      tpu.vector_store %arg5[%c0_25, %c0_26, %c0_27], %58 {strides = array<i32>} : memref<1x2x128xf32, #tpu.memory_space<vmem>>, vector<1x2x128xf32>,
    } else {
    }
    return
  }
  func.func @transform_0(%arg0: i32, %arg1: i32) -> (i32, i32) {
    %c1_i32 = arith.constant 1 : i32
    %0 = arith.muli %arg0, %c1_i32 : i32
    %1 = arith.addi %0, %arg1 : i32
    %c0_i32 = arith.constant 0 : i32
    %2 = arith.minsi %1, %c0_i32 : i32
    %c0_i32_0 = arith.constant 0 : i32
    %c0_i32_1 = arith.constant 0 : i32
    return %2, %c0_i32_0 : i32, i32
  }
  func.func @transform_1(%arg0: i32, %arg1: i32) -> (i32, i32) {
    %c1_i32 = arith.constant 1 : i32
    %0 = arith.muli %arg0, %c1_i32 : i32
    %1 = arith.addi %0, %arg1 : i32
    %c0_i32 = arith.constant 0 : i32
    %2 = arith.minsi %1, %c0_i32 : i32
    %c0_i32_0 = arith.constant 0 : i32
    %c0_i32_1 = arith.constant 0 : i32
    return %2, %c0_i32_0 : i32, i32
  }
  func.func @transform_2(%arg0: i32, %arg1: i32) -> (i32, i32) {
    %c1_i32 = arith.constant 1 : i32
    %0 = arith.muli %arg0, %c1_i32 : i32
    %1 = arith.addi %0, %arg1 : i32
    %c0_i32 = arith.constant 0 : i32
    %2 = arith.minsi %1, %c0_i32 : i32
    %c0_i32_0 = arith.constant 0 : i32
    %c0_i32_1 = arith.constant 0 : i32
    return %2, %c0_i32_0 : i32, i32
  }
  func.func @transform_3(%arg0: i32, %arg1: i32) -> (i32, i32, i32) {
    %c0_i32 = arith.constant 0 : i32
    %c0_i32_0 = arith.constant 0 : i32
    %c0_i32_1 = arith.constant 0 : i32
    return %arg0, %c0_i32, %c0_i32_0 : i32, i32, i32
  }
}

</mosaic_0001>

<llo_original>
// kernel: tpu_custom_call.1
$region0: #{tpu_custom_call.1}
  #allocation0 [shape = 'u32[]', space=smem, size = 0x4, offset = 0x4, fixed_abs, tag = 'smem constant byte address 0x4 - core index']
  #allocation1 [shape = 'u32[144,128]{1,0:T(1,128)}', space=vmem, size = 0x12000, scoped, tag = 'internal scratch']
  #allocation2 [shape = 'f32[8,1024]{1,0:T(8,128)}', space=vmem, size = 0x8000, scoped, tag = 'scratch operand']
  #allocation3 [shape = 'f32[8,1024]{1,0:T(8,128)}', space=vmem, size = 0x8000, scoped, tag = 'scratch operand']
  %s0 = inlined_call_operand.hbm [shape: f32[32,1024], index: 0, kind: input, shape index: {}]
  %s1 = inlined_call_operand.hbm [shape: f32[32,1024], index: 1, kind: input, shape index: {}]
  %s2 = inlined_call_operand.hbm [shape: f32[32,1024], index: 2, kind: input, shape index: {}]
  %s3 = inlined_call_operand.hbm [shape: f32[1,2,128], index: 3, kind: output, shape index: {}]
  %s4 = sld [smem:[#allocation0]]
  $region42: #{tpu_custom_call.1} parent=0
    _
  %s6 = ssub.s32 1, %s4
  %s7 = scalar_select 0, %s6, %s4
  $region1: #{tpu_custom_call.1} parent=0
    #allocation4 [shape = 'u8[131072]{0}', space=vmem, size = 0x20000, scoped, tag = 'input window, operand 0, single buffered']
    #allocation5 [shape = 's32[1]{0}', space=sflag, size = 0x4, scoped, tag = 'scoped memory for tpu_custom_call.1']
    #allocation6 [shape = 's32[1]{0}', space=sflag, size = 0x4, scoped, tag = 'scoped memory for tpu_custom_call.1']
    #allocation7 [shape = 'u8[131072]{0}', space=vmem, size = 0x20000, scoped, tag = 'input window, operand 1, single buffered']
    #allocation8 [shape = 's32[1]{0}', space=sflag, size = 0x4, scoped, tag = 'scoped memory for tpu_custom_call.1']
    #allocation9 [shape = 'u8[131072]{0}', space=vmem, size = 0x20000, scoped, tag = 'input window, operand 2, single buffered']
    #allocation10 [shape = 'u8[1024]{0}', space=vmem, size = 0x400, scoped, tag = 'output window, operand 0, single buffered']
    %8 = vsyncpa [#allocation5], 0
    %9 = vsyncpa [#allocation8], 0
    %10 = vsyncpa [#allocation6], 0
    // Predicated region
    $region2: #{tpu_custom_call.1} parent=1 // pred_check
      _
    $region3: #{tpu_custom_call.1} parent=1 // pred_check_branch
      %12 = sbr.rel (0) target = $region5
    $region4: #{tpu_custom_call.1} parent=1 // pred_region
      %s13 = sadd.s32 0, 0
      %p14 = scmp.lt.s32.totalorder %s13, 0
      %s15 = scalar_select %p14, %s13, 0
      %s16 = smul.u32 4, %s15
      %s18 = ssub.s32 4096, 4096
      %19 = vsyncadd [#allocation5], %s18
      %s20 = smul.addr %s16, 8
      %s21 = smul.addr %s20, 128
      %s22 = scalar_lea.hbm %s0, %s21
      %s23 = sshll.u32 [#allocation4], 4
      %s24 = int_to_ptr.vmem [resolvable:$true] %s23
      %29 = dma.hbm_to_vmem [thread:$0]  %s22, 4096, %s24, [#allocation5], 1024, 1024, 64
    $region5: #{tpu_custom_call.1} parent=1 // pred_fallthru
      _
    // Predicated region
    $region6: #{tpu_custom_call.1} parent=1 // pred_check
      _
    $region7: #{tpu_custom_call.1} parent=1 // pred_check_branch
      %31 = sbr.rel (0) target = $region9
    $region8: #{tpu_custom_call.1} parent=1 // pred_region
      %s32 = sadd.s32 0, 0
      %p33 = scmp.lt.s32.totalorder %s32, 0
      %s34 = scalar_select %p33, %s32, 0
      %s35 = smul.u32 4, %s34
      %s37 = ssub.s32 4096, 4096
      %38 = vsyncadd [#allocation8], %s37
      %s39 = smul.addr %s35, 8
      %s40 = smul.addr %s39, 128
      %s41 = scalar_lea.hbm %s1, %s40
      %s42 = sshll.u32 [#allocation7], 4
      %s43 = int_to_ptr.vmem [resolvable:$true] %s42
      %48 = dma.hbm_to_vmem [thread:$0]  %s41, 4096, %s43, [#allocation8], 1024, 1024, 64
    $region9: #{tpu_custom_call.1} parent=1 // pred_fallthru
      _
    // Predicated region
    $region10: #{tpu_custom_call.1} parent=1 // pred_check
      _
    $region11: #{tpu_custom_call.1} parent=1 // pred_check_branch
      %50 = sbr.rel (0) target = $region13
    $region12: #{tpu_custom_call.1} parent=1 // pred_region
      %s51 = sadd.s32 0, 0
      %p52 = scmp.lt.s32.totalorder %s51, 0
      %s53 = scalar_select %p52, %s51, 0
      %s54 = smul.u32 4, %s53
      %s56 = ssub.s32 4096, 4096
      %57 = vsyncadd [#allocation8], %s56
      %s58 = smul.addr %s54, 8
      %s59 = smul.addr %s58, 128
      %s60 = scalar_lea.hbm %s2, %s59
      %s61 = sshll.u32 [#allocation9], 4
      %s62 = int_to_ptr.vmem [resolvable:$true] %s61
      %67 = dma.hbm_to_vmem [thread:$0]  %s60, 4096, %s62, [#allocation8], 1024, 1024, 64
    $region13: #{tpu_custom_call.1} parent=1 // pred_fallthru
      _
    // Predicated region
    $region14: #{tpu_custom_call.1} parent=1 // pred_check
      _
    $region15: #{tpu_custom_call.1} parent=1 // pred_check_branch
      %69 = sbr.rel (0) target = $region17
    $region16: #{tpu_custom_call.1} parent=1 // pred_region
      %70 = dma.done [#allocation5], 4096
    $region17: #{tpu_custom_call.1} parent=1 // pred_fallthru
      _
    // Predicated region
    $region18: #{tpu_custom_call.1} parent=1 // pred_check
      _
    $region19: #{tpu_custom_call.1} parent=1 // pred_check_branch
      %72 = sbr.rel (0) target = $region21
    $region20: #{tpu_custom_call.1} parent=1 // pred_region
      %73 = dma.done [#allocation8], 4096
    $region21: #{tpu_custom_call.1} parent=1 // pred_fallthru
      _
    // Predicated region
    $region22: #{tpu_custom_call.1} parent=1 // pred_check
      _
    $region23: #{tpu_custom_call.1} parent=1 // pred_check_branch
      %75 = sbr.rel (0) target = $region25
    $region24: #{tpu_custom_call.1} parent=1 // pred_region
      %76 = dma.done [#allocation8], 4096
    $region25: #{tpu_custom_call.1} parent=1 // pred_fallthru
      _
    %s77 = sadd.s32 0, 0
    %p78 = scmp.lt.s32.totalorder %s77, 0
    %s79 = scalar_select %p78, %s77, 0
    %s80 = smul.u32 4, %s79
    %s81 = sadd.s32 0, 0
    %p82 = scmp.lt.s32.totalorder %s81, 0
    %s83 = scalar_select %p82, %s81, 0
    %s84 = smul.u32 4, %s83
    %s85 = sadd.s32 0, 0
    %p86 = scmp.lt.s32.totalorder %s85, 0
    %s87 = scalar_select %p86, %s85, 0
    %s88 = smul.u32 4, %s87
    %p89 = scmp.eq.s32.totalorder 0, 0
    // Predicated region
    $region26: #{tpu_custom_call.1} parent=1 // pred_check
      %p90 = pneg %p89
    $region27: #{tpu_custom_call.1} parent=1 // pred_check_branch
      %92 = sbr.rel (%p90) target = $region29
    $region28: #{tpu_custom_call.1} parent=1 // pred_region
      %93 = vst [vmem:[#allocation2] sm:$0xff] 0.0
      %94 = vst [vmem:[#allocation2 + $0x8] sm:$0xff] 0.0
      %95 = vst [vmem:[#allocation2 + $0x10] sm:$0xff] 0.0
      %96 = vst [vmem:[#allocation2 + $0x18] sm:$0xff] 0.0
      %97 = vst [vmem:[#allocation2 + $0x20] sm:$0xff] 0.0
      %98 = vst [vmem:[#allocation2 + $0x28] sm:$0xff] 0.0
      %99 = vst [vmem:[#allocation2 + $0x30] sm:$0xff] 0.0
      %100 = vst [vmem:[#allocation2 + $0x38] sm:$0xff] 0.0
      %101 = vst [vmem:[#allocation3] sm:$0xff] 0.0
      %102 = vst [vmem:[#allocation3 + $0x8] sm:$0xff] 0.0
      %103 = vst [vmem:[#allocation3 + $0x10] sm:$0xff] 0.0
      %104 = vst [vmem:[#allocation3 + $0x18] sm:$0xff] 0.0
      %105 = vst [vmem:[#allocation3 + $0x20] sm:$0xff] 0.0
      %106 = vst [vmem:[#allocation3 + $0x28] sm:$0xff] 0.0
      %107 = vst [vmem:[#allocation3 + $0x30] sm:$0xff] 0.0
      %108 = vst [vmem:[#allocation3 + $0x38] sm:$0xff] 0.0
    $region29: #{tpu_custom_call.1} parent=1 // pred_fallthru
      _
    %s109 = sadd.s32 0, 0
    %s110 = smul.u32 %s109, 32
    %s111 = smul.u32 0, 8
    %s112 = smul.addr %s111, 8
    %s113 = scalar_lea.vmem [#allocation4], %s112
    %v114 = vld [vmem:[%s113] sm:$0xff]
    %v115 = vld [vmem:[%s113 + $0x8] sm:$0xff]
    %v116 = vld [vmem:[%s113 + $0x10] sm:$0xff]
    %v117 = vld [vmem:[%s113 + $0x18] sm:$0xff]
    %v118 = vld [vmem:[%s113 + $0x20] sm:$0xff]
    %v119 = vld [vmem:[%s113 + $0x28] sm:$0xff]
    %v120 = vld [vmem:[%s113 + $0x30] sm:$0xff]
    %v121 = vld [vmem:[%s113 + $0x38] sm:$0xff]
    %v122 = vld [vmem:[%s113 + $0x40] sm:$0xff]
    %v123 = vld [vmem:[%s113 + $0x48] sm:$0xff]
    %v124 = vld [vmem:[%s113 + $0x50] sm:$0xff]
    %v125 = vld [vmem:[%s113 + $0x58] sm:$0xff]
    %v126 = vld [vmem:[%s113 + $0x60] sm:$0xff]
    %v127 = vld [vmem:[%s113 + $0x68] sm:$0xff]
    %v128 = vld [vmem:[%s113 + $0x70] sm:$0xff]
    %v129 = vld [vmem:[%s113 + $0x78] sm:$0xff]
    %v130 = vld [vmem:[%s113 + $0x80] sm:$0xff]
    %v131 = vld [vmem:[%s113 + $0x88] sm:$0xff]
    %v132 = vld [vmem:[%s113 + $0x90] sm:$0xff]
    %v133 = vld [vmem:[%s113 + $0x98] sm:$0xff]
    %v134 = vld [vmem:[%s113 + $0xa0] sm:$0xff]
    %v135 = vld [vmem:[%s113 + $0xa8] sm:$0xff]
    %v136 = vld [vmem:[%s113 + $0xb0] sm:$0xff]
    %v137 = vld [vmem:[%s113 + $0xb8] sm:$0xff]
    %v138 = vld [vmem:[%s113 + $0xc0] sm:$0xff]
    %v139 = vld [vmem:[%s113 + $0xc8] sm:$0xff]
    %v140 = vld [vmem:[%s113 + $0xd0] sm:$0xff]
    %v141 = vld [vmem:[%s113 + $0xd8] sm:$0xff]
    %v142 = vld [vmem:[%s113 + $0xe0] sm:$0xff]
    %v143 = vld [vmem:[%s113 + $0xe8] sm:$0xff]
    %v144 = vld [vmem:[%s113 + $0xf0] sm:$0xff]
    %v145 = vld [vmem:[%s113 + $0xf8] sm:$0xff]
    %s146 = smul.addr %s111, 8
    %s147 = scalar_lea.vmem [#allocation7], %s146
    %v148 = vld [vmem:[%s147] sm:$0xff]
    %v149 = vld [vmem:[%s147 + $0x8] sm:$0xff]
    %v150 = vld [vmem:[%s147 + $0x10] sm:$0xff]
    %v151 = vld [vmem:[%s147 + $0x18] sm:$0xff]
    %v152 = vld [vmem:[%s147 + $0x20] sm:$0xff]
    %v153 = vld [vmem:[%s147 + $0x28] sm:$0xff]
    %v154 = vld [vmem:[%s147 + $0x30] sm:$0xff]
    %v155 = vld [vmem:[%s147 + $0x38] sm:$0xff]
    %v156 = vld [vmem:[%s147 + $0x40] sm:$0xff]
    %v157 = vld [vmem:[%s147 + $0x48] sm:$0xff]
    %v158 = vld [vmem:[%s147 + $0x50] sm:$0xff]
    %v159 = vld [vmem:[%s147 + $0x58] sm:$0xff]
    %v160 = vld [vmem:[%s147 + $0x60] sm:$0xff]
    %v161 = vld [vmem:[%s147 + $0x68] sm:$0xff]
    %v162 = vld [vmem:[%s147 + $0x70] sm:$0xff]
    %v163 = vld [vmem:[%s147 + $0x78] sm:$0xff]
    %v164 = vld [vmem:[%s147 + $0x80] sm:$0xff]
    %v165 = vld [vmem:[%s147 + $0x88] sm:$0xff]
    %v166 = vld [vmem:[%s147 + $0x90] sm:$0xff]
    %v167 = vld [vmem:[%s147 + $0x98] sm:$0xff]
    %v168 = vld [vmem:[%s147 + $0xa0] sm:$0xff]
    %v169 = vld [vmem:[%s147 + $0xa8] sm:$0xff]
    %v170 = vld [vmem:[%s147 + $0xb0] sm:$0xff]
    %v171 = vld [vmem:[%s147 + $0xb8] sm:$0xff]
    %v172 = vld [vmem:[%s147 + $0xc0] sm:$0xff]
    %v173 = vld [vmem:[%s147 + $0xc8] sm:$0xff]
    %v174 = vld [vmem:[%s147 + $0xd0] sm:$0xff]
    %v175 = vld [vmem:[%s147 + $0xd8] sm:$0xff]
    %v176 = vld [vmem:[%s147 + $0xe0] sm:$0xff]
    %v177 = vld [vmem:[%s147 + $0xe8] sm:$0xff]
    %v178 = vld [vmem:[%s147 + $0xf0] sm:$0xff]
    %v179 = vld [vmem:[%s147 + $0xf8] sm:$0xff]
    %s180 = smul.addr %s111, 8
    %s181 = scalar_lea.vmem [#allocation9], %s180
    %v182 = vld [vmem:[%s181] sm:$0xff]
    %v183 = vld [vmem:[%s181 + $0x8] sm:$0xff]
    %v184 = vld [vmem:[%s181 + $0x10] sm:$0xff]
    %v185 = vld [vmem:[%s181 + $0x18] sm:$0xff]
    %v186 = vld [vmem:[%s181 + $0x20] sm:$0xff]
    %v187 = vld [vmem:[%s181 + $0x28] sm:$0xff]
    %v188 = vld [vmem:[%s181 + $0x30] sm:$0xff]
    %v189 = vld [vmem:[%s181 + $0x38] sm:$0xff]
    %v190 = vld [vmem:[%s181 + $0x40] sm:$0xff]
    %v191 = vld [vmem:[%s181 + $0x48] sm:$0xff]
    %v192 = vld [vmem:[%s181 + $0x50] sm:$0xff]
    %v193 = vld [vmem:[%s181 + $0x58] sm:$0xff]
    %v194 = vld [vmem:[%s181 + $0x60] sm:$0xff]
    %v195 = vld [vmem:[%s181 + $0x68] sm:$0xff]
    %v196 = vld [vmem:[%s181 + $0x70] sm:$0xff]
    %v197 = vld [vmem:[%s181 + $0x78] sm:$0xff]
    %v198 = vld [vmem:[%s181 + $0x80] sm:$0xff]
    %v199 = vld [vmem:[%s181 + $0x88] sm:$0xff]
    %v200 = vld [vmem:[%s181 + $0x90] sm:$0xff]
    %v201 = vld [vmem:[%s181 + $0x98] sm:$0xff]
    %v202 = vld [vmem:[%s181 + $0xa0] sm:$0xff]
    %v203 = vld [vmem:[%s181 + $0xa8] sm:$0xff]
    %v204 = vld [vmem:[%s181 + $0xb0] sm:$0xff]
    %v205 = vld [vmem:[%s181 + $0xb8] sm:$0xff]
    %v206 = vld [vmem:[%s181 + $0xc0] sm:$0xff]
    %v207 = vld [vmem:[%s181 + $0xc8] sm:$0xff]
    %v208 = vld [vmem:[%s181 + $0xd0] sm:$0xff]
    %v209 = vld [vmem:[%s181 + $0xd8] sm:$0xff]
    %v210 = vld [vmem:[%s181 + $0xe0] sm:$0xff]
    %v211 = vld [vmem:[%s181 + $0xe8] sm:$0xff]
    %v212 = vld [vmem:[%s181 + $0xf0] sm:$0xff]
    %v213 = vld [vmem:[%s181 + $0xf8] sm:$0xff]
    %v214 = vsub.f32 %v114, %v148
    %v215 = vsub.f32 %v115, %v149
    %v216 = vsub.f32 %v116, %v150
    %v217 = vsub.f32 %v117, %v151
    %v218 = vsub.f32 %v118, %v152
    %v219 = vsub.f32 %v119, %v153
    %v220 = vsub.f32 %v120, %v154
    %v221 = vsub.f32 %v121, %v155
    %v222 = vsub.f32 %v122, %v156
    %v223 = vsub.f32 %v123, %v157
    %v224 = vsub.f32 %v124, %v158
    %v225 = vsub.f32 %v125, %v159
    %v226 = vsub.f32 %v126, %v160
    %v227 = vsub.f32 %v127, %v161
    %v228 = vsub.f32 %v128, %v162
    %v229 = vsub.f32 %v129, %v163
    %v230 = vsub.f32 %v130, %v164
    %v231 = vsub.f32 %v131, %v165
    %v232 = vsub.f32 %v132, %v166
    %v233 = vsub.f32 %v133, %v167
    %v234 = vsub.f32 %v134, %v168
    %v235 = vsub.f32 %v135, %v169
    %v236 = vsub.f32 %v136, %v170
    %v237 = vsub.f32 %v137, %v171
    %v238 = vsub.f32 %v138, %v172
    %v239 = vsub.f32 %v139, %v173
    %v240 = vsub.f32 %v140, %v174
    %v241 = vsub.f32 %v141, %v175
    %v242 = vsub.f32 %v142, %v176
    %v243 = vsub.f32 %v143, %v177
    %v244 = vsub.f32 %v144, %v178
    %v245 = vsub.f32 %v145, %v179
    %s246 = sadd.s32 %s110, 0
    %v247 = vlaneseq
    %v248 = vshrl.u32 %v247, 7
    %v249 = vadd.s32 %v248, 8
    %v250 = vadd.s32 %v248, 16
    %v251 = vadd.s32 %v248, 24
    %v252 = vstv %s246
    %v253 = vadd.s32 %v252, %v248
    %v254 = vadd.s32 %v252, %v249
    %v255 = vadd.s32 %v252, %v250
    %v256 = vadd.s32 %v252, %v251
    %vm257 = vcmp.lt.s32.totalorder %v253, 1
    %vm258 = vcmp.lt.s32.totalorder %v254, 1
    %vm259 = vcmp.lt.s32.totalorder %v255, 1
    %vm260 = vcmp.lt.s32.totalorder %v256, 1
    %v261 = vmul.f32 %v182, %v214
    %v262 = vmul.f32 %v183, %v215
    %v263 = vmul.f32 %v184, %v216
    %v264 = vmul.f32 %v185, %v217
    %v265 = vmul.f32 %v186, %v218
    %v266 = vmul.f32 %v187, %v219
    %v267 = vmul.f32 %v188, %v220
    %v268 = vmul.f32 %v189, %v221
    %v269 = vmul.f32 %v190, %v222
    %v270 = vmul.f32 %v191, %v223
    %v271 = vmul.f32 %v192, %v224
    %v272 = vmul.f32 %v193, %v225
    %v273 = vmul.f32 %v194, %v226
    %v274 = vmul.f32 %v195, %v227
    %v275 = vmul.f32 %v196, %v228
    %v276 = vmul.f32 %v197, %v229
    %v277 = vmul.f32 %v198, %v230
    %v278 = vmul.f32 %v199, %v231
    %v279 = vmul.f32 %v200, %v232
    %v280 = vmul.f32 %v201, %v233
    %v281 = vmul.f32 %v202, %v234
    %v282 = vmul.f32 %v203, %v235
    %v283 = vmul.f32 %v204, %v236
    %v284 = vmul.f32 %v205, %v237
    %v285 = vmul.f32 %v206, %v238
    %v286 = vmul.f32 %v207, %v239
    %v287 = vmul.f32 %v208, %v240
    %v288 = vmul.f32 %v209, %v241
    %v289 = vmul.f32 %v210, %v242
    %v290 = vmul.f32 %v211, %v243
    %v291 = vmul.f32 %v212, %v244
    %v292 = vmul.f32 %v213, %v245
    %v293 = vmul.f32 %v261, %v214
    %v294 = vmul.f32 %v262, %v215
    %v295 = vmul.f32 %v263, %v216
    %v296 = vmul.f32 %v264, %v217
    %v297 = vmul.f32 %v265, %v218
    %v298 = vmul.f32 %v266, %v219
    %v299 = vmul.f32 %v267, %v220
    %v300 = vmul.f32 %v268, %v221
    %v301 = vmul.f32 %v269, %v222
    %v302 = vmul.f32 %v270, %v223
    %v303 = vmul.f32 %v271, %v224
    %v304 = vmul.f32 %v272, %v225
    %v305 = vmul.f32 %v273, %v226
    %v306 = vmul.f32 %v274, %v227
    %v307 = vmul.f32 %v275, %v228
    %v308 = vmul.f32 %v276, %v229
    %v309 = vmul.f32 %v277, %v230
    %v310 = vmul.f32 %v278, %v231
    %v311 = vmul.f32 %v279, %v232
    %v312 = vmul.f32 %v280, %v233
    %v313 = vmul.f32 %v281, %v234
    %v314 = vmul.f32 %v282, %v235
    %v315 = vmul.f32 %v283, %v236
    %v316 = vmul.f32 %v284, %v237
    %v317 = vmul.f32 %v285, %v238
    %v318 = vmul.f32 %v286, %v239
    %v319 = vmul.f32 %v287, %v240
    %v320 = vmul.f32 %v288, %v241
    %v321 = vmul.f32 %v289, %v242
    %v322 = vmul.f32 %v290, %v243
    %v323 = vmul.f32 %v291, %v244
    %v324 = vmul.f32 %v292, %v245
    %v325 = vsel %vm257, 1, 0
    %v326 = vsel %vm258, 1, 0
    %v327 = vsel %vm259, 1, 0
    %v328 = vsel %vm260, 1, 0
    %vm329 = vcmp.eq.s32.totalorder %v325, 1
    %vm330 = vcmp.eq.s32.totalorder %v326, 1
    %vm331 = vcmp.eq.s32.totalorder %v327, 1
    %vm332 = vcmp.eq.s32.totalorder %v328, 1
    %v333 = vsel %vm329, %v293, 0.0
    %v334 = vsel %vm329, %v294, 0.0
    %v335 = vsel %vm329, %v295, 0.0
    %v336 = vsel %vm329, %v296, 0.0
    %v337 = vsel %vm329, %v297, 0.0
    %v338 = vsel %vm329, %v298, 0.0
    %v339 = vsel %vm329, %v299, 0.0
    %v340 = vsel %vm329, %v300, 0.0
    %v341 = vsel %vm330, %v301, 0.0
    %v342 = vsel %vm330, %v302, 0.0
    %v343 = vsel %vm330, %v303, 0.0
    %v344 = vsel %vm330, %v304, 0.0
    %v345 = vsel %vm330, %v305, 0.0
    %v346 = vsel %vm330, %v306, 0.0
    %v347 = vsel %vm330, %v307, 0.0
    %v348 = vsel %vm330, %v308, 0.0
    %v349 = vsel %vm331, %v309, 0.0
    %v350 = vsel %vm331, %v310, 0.0
    %v351 = vsel %vm331, %v311, 0.0
    %v352 = vsel %vm331, %v312, 0.0
    %v353 = vsel %vm331, %v313, 0.0
    %v354 = vsel %vm331, %v314, 0.0
    %v355 = vsel %vm331, %v315, 0.0
    %v356 = vsel %vm331, %v316, 0.0
    %v357 = vsel %vm332, %v317, 0.0
    %v358 = vsel %vm332, %v318, 0.0
    %v359 = vsel %vm332, %v319, 0.0
    %v360 = vsel %vm332, %v320, 0.0
    %v361 = vsel %vm332, %v321, 0.0
    %v362 = vsel %vm332, %v322, 0.0
    %v363 = vsel %vm332, %v323, 0.0
    %v364 = vsel %vm332, %v324, 0.0
    %v365 = vsel %vm329, %v182, 0.0
    %v366 = vsel %vm329, %v183, 0.0
    %v367 = vsel %vm329, %v184, 0.0
    %v368 = vsel %vm329, %v185, 0.0
    %v369 = vsel %vm329, %v186, 0.0
    %v370 = vsel %vm329, %v187, 0.0
    %v371 = vsel %vm329, %v188, 0.0
    %v372 = vsel %vm329, %v189, 0.0
    %v373 = vsel %vm330, %v190, 0.0
    %v374 = vsel %vm330, %v191, 0.0
    %v375 = vsel %vm330, %v192, 0.0
    %v376 = vsel %vm330, %v193, 0.0
    %v377 = vsel %vm330, %v194, 0.0
    %v378 = vsel %vm330, %v195, 0.0
    %v379 = vsel %vm330, %v196, 0.0
    %v380 = vsel %vm330, %v197, 0.0
    %v381 = vsel %vm331, %v198, 0.0
    %v382 = vsel %vm331, %v199, 0.0
    %v383 = vsel %vm331, %v200, 0.0
    %v384 = vsel %vm331, %v201, 0.0
    %v385 = vsel %vm331, %v202, 0.0
    %v386 = vsel %vm331, %v203, 0.0
    %v387 = vsel %vm331, %v204, 0.0
    %v388 = vsel %vm331, %v205, 0.0
    %v389 = vsel %vm332, %v206, 0.0
    %v390 = vsel %vm332, %v207, 0.0
    %v391 = vsel %vm332, %v208, 0.0
    %v392 = vsel %vm332, %v209, 0.0
    %v393 = vsel %vm332, %v210, 0.0
    %v394 = vsel %vm332, %v211, 0.0
    %v395 = vsel %vm332, %v212, 0.0
    %v396 = vsel %vm332, %v213, 0.0
    %v397 = vld [vmem:[#allocation2] sm:$0xff]
    %v398 = vld [vmem:[#allocation2 + $0x8] sm:$0xff]
    %v399 = vld [vmem:[#allocation2 + $0x10] sm:$0xff]
    %v400 = vld [vmem:[#allocation2 + $0x18] sm:$0xff]
    %v401 = vld [vmem:[#allocation2 + $0x20] sm:$0xff]
    %v402 = vld [vmem:[#allocation2 + $0x28] sm:$0xff]
    %v403 = vld [vmem:[#allocation2 + $0x30] sm:$0xff]
    %v404 = vld [vmem:[#allocation2 + $0x38] sm:$0xff]
    %v405 = vadd.f32 %v333, %v341
    %v406 = vadd.f32 %v405, %v349
    %v407 = vadd.f32 %v406, %v357
    %v408 = vadd.f32 %v334, %v342
    %v409 = vadd.f32 %v408, %v350
    %v410 = vadd.f32 %v409, %v358
    %v411 = vadd.f32 %v335, %v343
    %v412 = vadd.f32 %v411, %v351
    %v413 = vadd.f32 %v412, %v359
    %v414 = vadd.f32 %v336, %v344
    %v415 = vadd.f32 %v414, %v352
    %v416 = vadd.f32 %v415, %v360
    %v417 = vadd.f32 %v337, %v345
    %v418 = vadd.f32 %v417, %v353
    %v419 = vadd.f32 %v418, %v361
    %v420 = vadd.f32 %v338, %v346
    %v421 = vadd.f32 %v420, %v354
    %v422 = vadd.f32 %v421, %v362
    %v423 = vadd.f32 %v339, %v347
    %v424 = vadd.f32 %v423, %v355
    %v425 = vadd.f32 %v424, %v363
    %v426 = vadd.f32 %v340, %v348
    %v427 = vadd.f32 %v426, %v356
    %v428 = vadd.f32 %v427, %v364
    %v429 = vadd.f32 %v397, %v407
    %v430 = vadd.f32 %v398, %v410
    %v431 = vadd.f32 %v399, %v413
    %v432 = vadd.f32 %v400, %v416
    %v433 = vadd.f32 %v401, %v419
    %v434 = vadd.f32 %v402, %v422
    %v435 = vadd.f32 %v403, %v425
    %v436 = vadd.f32 %v404, %v428
    %437 = vst [vmem:[#allocation2] sm:$0xff] %v429
    %438 = vst [vmem:[#allocation2 + $0x8] sm:$0xff] %v430
    %439 = vst [vmem:[#allocation2 + $0x10] sm:$0xff] %v431
    %440 = vst [vmem:[#allocation2 + $0x18] sm:$0xff] %v432
    %441 = vst [vmem:[#allocation2 + $0x20] sm:$0xff] %v433
    %442 = vst [vmem:[#allocation2 + $0x28] sm:$0xff] %v434
    %443 = vst [vmem:[#allocation2 + $0x30] sm:$0xff] %v435
    %444 = vst [vmem:[#allocation2 + $0x38] sm:$0xff] %v436
    %v445 = vld [vmem:[#allocation3] sm:$0xff]
    %v446 = vld [vmem:[#allocation3 + $0x8] sm:$0xff]
    %v447 = vld [vmem:[#allocation3 + $0x10] sm:$0xff]
    %v448 = vld [vmem:[#allocation3 + $0x18] sm:$0xff]
    %v449 = vld [vmem:[#allocation3 + $0x20] sm:$0xff]
    %v450 = vld [vmem:[#allocation3 + $0x28] sm:$0xff]
    %v451 = vld [vmem:[#allocation3 + $0x30] sm:$0xff]
    %v452 = vld [vmem:[#allocation3 + $0x38] sm:$0xff]
    %v453 = vadd.f32 %v365, %v373
    %v454 = vadd.f32 %v453, %v381
    %v455 = vadd.f32 %v454, %v389
    %v456 = vadd.f32 %v366, %v374
    %v457 = vadd.f32 %v456, %v382
    %v458 = vadd.f32 %v457, %v390
    %v459 = vadd.f32 %v367, %v375
    %v460 = vadd.f32 %v459, %v383
    %v461 = vadd.f32 %v460, %v391
    %v462 = vadd.f32 %v368, %v376
    %v463 = vadd.f32 %v462, %v384
    %v464 = vadd.f32 %v463, %v392
    %v465 = vadd.f32 %v369, %v377
    %v466 = vadd.f32 %v465, %v385
    %v467 = vadd.f32 %v466, %v393
    %v468 = vadd.f32 %v370, %v378
    %v469 = vadd.f32 %v468, %v386
    %v470 = vadd.f32 %v469, %v394
    %v471 = vadd.f32 %v371, %v379
    %v472 = vadd.f32 %v471, %v387
    %v473 = vadd.f32 %v472, %v395
    %v474 = vadd.f32 %v372, %v380
    %v475 = vadd.f32 %v474, %v388
    %v476 = vadd.f32 %v475, %v396
    %v477 = vadd.f32 %v445, %v455
    %v478 = vadd.f32 %v446, %v458
    %v479 = vadd.f32 %v447, %v461
    %v480 = vadd.f32 %v448, %v464
    %v481 = vadd.f32 %v449, %v467
    %v482 = vadd.f32 %v450, %v470
    %v483 = vadd.f32 %v451, %v473
    %v484 = vadd.f32 %v452, %v476
    %485 = vst [vmem:[#allocation3] sm:$0xff] %v477
    %486 = vst [vmem:[#allocation3 + $0x8] sm:$0xff] %v478
    %487 = vst [vmem:[#allocation3 + $0x10] sm:$0xff] %v479
    %488 = vst [vmem:[#allocation3 + $0x18] sm:$0xff] %v480
    %489 = vst [vmem:[#allocation3 + $0x20] sm:$0xff] %v481
    %490 = vst [vmem:[#allocation3 + $0x28] sm:$0xff] %v482
    %491 = vst [vmem:[#allocation3 + $0x30] sm:$0xff] %v483
    %492 = vst [vmem:[#allocation3 + $0x38] sm:$0xff] %v484
    // Predicated region
    $region30: #{tpu_custom_call.1} parent=1 // pred_check
      %p493 = pneg %p89
    $region31: #{tpu_custom_call.1} parent=1 // pred_check_branch
      %495 = sbr.rel (%p493) target = $region33
    $region32: #{tpu_custom_call.1} parent=1 // pred_region
      %v496 = vld [vmem:[#allocation2] sm:$0xff]
      %v497 = vld [vmem:[#allocation2 + $0x8] sm:$0xff]
      %v498 = vld [vmem:[#allocation2 + $0x10] sm:$0xff]
      %v499 = vld [vmem:[#allocation2 + $0x18] sm:$0xff]
      %v500 = vld [vmem:[#allocation2 + $0x20] sm:$0xff]
      %v501 = vld [vmem:[#allocation2 + $0x28] sm:$0xff]
      %v502 = vld [vmem:[#allocation2 + $0x30] sm:$0xff]
      %v503 = vld [vmem:[#allocation2 + $0x38] sm:$0xff]
      %v504 = vadd.f32 %v496, %v497
      %v505 = vadd.f32 %v504, %v498
      %v506 = vadd.f32 %v505, %v499
      %v507 = vadd.f32 %v506, %v500
      %v508 = vadd.f32 %v507, %v501
      %v509 = vadd.f32 %v508, %v502
      %v510 = vadd.f32 %v509, %v503
      %511 = vadd.xlane.f32.xlu0 %v510
      %v512 = vpop.xlane.xlu0 %511
      %v513 = vrot.slane %v512, 4
      %v514 = vadd.f32 %v512, %v513
      %v515 = vrot.slane %v514, 2
      %v516 = vadd.f32 %v514, %v515
      %v517 = vrot.slane %v516, 1
      %v518 = vadd.f32 %v516, %v517
      %s519 = vtos %v518
      %v520 = vld [vmem:[#allocation3] sm:$0xff]
      %v521 = vld [vmem:[#allocation3 + $0x8] sm:$0xff]
      %v522 = vld [vmem:[#allocation3 + $0x10] sm:$0xff]
      %v523 = vld [vmem:[#allocation3 + $0x18] sm:$0xff]
      %v524 = vld [vmem:[#allocation3 + $0x20] sm:$0xff]
      %v525 = vld [vmem:[#allocation3 + $0x28] sm:$0xff]
      %v526 = vld [vmem:[#allocation3 + $0x30] sm:$0xff]
      %v527 = vld [vmem:[#allocation3 + $0x38] sm:$0xff]
      %v528 = vadd.f32 %v520, %v521
      %v529 = vadd.f32 %v528, %v522
      %v530 = vadd.f32 %v529, %v523
      %v531 = vadd.f32 %v530, %v524
      %v532 = vadd.f32 %v531, %v525
      %v533 = vadd.f32 %v532, %v526
      %v534 = vadd.f32 %v533, %v527
      %535 = vadd.xlane.f32.xlu0 %v534
      %v536 = vpop.xlane.xlu0 %535
      %v537 = vrot.slane %v536, 4
      %v538 = vadd.f32 %v536, %v537
      %v539 = vrot.slane %v538, 2
      %v540 = vadd.f32 %v538, %v539
      %v541 = vrot.slane %v540, 1
      %v542 = vadd.f32 %v540, %v541
      %s543 = vtos %v542
      %vm544 = vcmp.eq.s32.totalorder %v248, 0
      %v545 = vstv %s519
      %v546 = vstv %s543
      %v547 = vsel %vm544, %v545, %v546
      %548 = vst [vmem:[#allocation10] sm:$0x3] %v547
    $region33: #{tpu_custom_call.1} parent=1 // pred_fallthru
      _
    // Predicated region
    $region34: #{tpu_custom_call.1} parent=1 // pred_check
      _
    $region35: #{tpu_custom_call.1} parent=1 // pred_check_branch
      %550 = sbr.rel (0) target = $region37
    $region36: #{tpu_custom_call.1} parent=1 // pred_region
      %s552 = ssub.s32 32, 32
      %553 = vsyncadd [#allocation6], %s552
      %s555 = sshll.u32 [#allocation10], 4
      %s556 = int_to_ptr.vmem [resolvable:$true] %s555
      %558 = dma.vmem_to_hbm [thread:$0]  %s556, 32, %s3, [#allocation6]
    $region37: #{tpu_custom_call.1} parent=1 // pred_fallthru
      _
    // Predicated region
    $region38: #{tpu_custom_call.1} parent=1 // pred_check
      _
    $region39: #{tpu_custom_call.1} parent=1 // pred_check_branch
      %560 = sbr.rel (0) target = $region41
    $region40: #{tpu_custom_call.1} parent=1 // pred_region
      %561 = dma.done [#allocation6], 32
    $region41: #{tpu_custom_call.1} parent=1 // pred_fallthru
      _
    %562 = vsyncpa [#allocation5], 1
    %563 = vsyncpa [#allocation8], 1
    %564 = vsyncpa [#allocation6], 1

</llo_original>
